<compile_context>
chip_gen: v6e
topology: v6e:2x2x1
jax: 0.10.0
libtpu: 0.0.40
codegen_flags: <defaults>
</compile_context>

<pallas_src>
import functools

import jax
import jax.numpy as jnp
from jax.experimental import pallas as pl
from jax.experimental.pallas import tpu as pltpu


def _round_up(a, b):
    return ((a + b - 1) // b) * b


def _largest_divisor_leq(n, cap):
    cap = max(1, min(n, cap))
    for d in range(cap, 0, -1):
        if n % d == 0:
            return d
    return 1


def _outconv_kernel_vpu(x_ref, w_ref, b_ref, o_ref, *, nb, cin):
    # Tiny-channel path: unrolled broadcast FMAs on the VPU.
    # x_ref: (nb, Cin, thw)  w_ref: (Cout, Cin)  b_ref: (Cout, 1)
    # o_ref: (nb, Cout, thw)
    w = w_ref[...].astype(jnp.float32)
    b = b_ref[...].astype(jnp.float32)
    for i in range(nb):                            # static unroll over batch
        acc = b + w[:, 0:1] * x_ref[i, 0:1, :].astype(jnp.float32)
        for ci in range(1, cin):                   # static unroll, Cin tiny
            acc = acc + w[:, ci:ci + 1] * x_ref[i, ci:ci + 1, :].astype(jnp.float32)
        o_ref[i] = acc.astype(o_ref.dtype)


def _outconv_kernel_mxu(x_ref, w_ref, b_ref, o_ref, *, nb):
    # MXU path: (Cout, Cin) @ (Cin, thw) with f32 accumulation; one matmul per
    # batch element in the block.  Output stays lane-dense on the spatial axis.
    w = w_ref[...]
    b = b_ref[...].astype(jnp.float32)
    for i in range(nb):                            # static unroll over batch
        acc = jnp.dot(w, x_ref[i], preferred_element_type=jnp.float32)
        o_ref[i] = (acc + b).astype(o_ref.dtype)


def outconv_pallas(x_nchw, weight, bias, *, target_step_bytes=2 << 20):
    """1x1 conv (OutConv). x: (N,Cin,H,W), weight: (Cout,Cin,1,1), bias: (Cout,)."""
    N, Cin, H, W = x_nchw.shape
    Cout = weight.shape[0]
    HW = H * W

    # Free reshapes only (no transposes): spatial (H*W) is the lane axis.
    x = x_nchw.reshape(N, Cin, HW)
    w = weight.reshape(Cout, Cin)
    b = bias.reshape(Cout, 1)

    itemsize = jnp.dtype(x_nchw.dtype).itemsize
    w_itemsize = jnp.dtype(weight.dtype).itemsize
    bytes_per_col = (Cin + Cout) * itemsize        # in + out bytes per pixel

    # Generation-aware VMEM budget (v7x: 64 MiB/core; v5e/v6e: 128 MiB).
    try:
        vmem_cap = int(pltpu.get_tpu_info().vmem_capacity_bytes)
    except Exception:  # most conservative generation (v7x) as fallback
        vmem_cap = 64 << 20
    vmem_budget = int(vmem_cap * 0.6)              # headroom for scratch etc.

    # Spatial tile: lane-aligned, sized so one grid step moves ~target bytes,
    # capped so double-buffered in+out tiles fit the VMEM budget.
    step_bytes_cap = max(min(target_step_bytes, vmem_budget // 2), 1)
    thw_cap = max(128, (step_bytes_cap // bytes_per_col) // 128 * 128)
    if _round_up(HW, 128) <= thw_cap:
        thw = HW                                   # one full-width spatial tile
        hw_tiles = 1
    else:
        thw = thw_cap
        hw_tiles = pl.cdiv(HW, thw)                # ragged last tile is clipped

    # If one tile covers the whole image, pack several batch elements per step.
    nb = 1
    if hw_tiles == 1 and N > 1:
        per_n_bytes = bytes_per_col * _round_up(thw, 128)
        nb_cap = min(step_bytes_cap // max(per_n_bytes, 1), N)
        nb = _largest_divisor_leq(N, int(max(nb_cap, 1)))
    n_tiles = N // nb
    grid = (n_tiles, hw_tiles)

    # Exact VMEM footprint: double-buffered in+out tiles + resident W, b
    # (shapes padded to the (8, 128) layout tiles), plus headroom.
    cin_p, cout_p = _round_up(Cin, 8), _round_up(Cout, 8)
    thw_p = _round_up(thw, 128)
    buf_bytes = 2 * nb * thw_p * (cin_p + cout_p) * itemsize
    wb_bytes = (cout_p * _round_up(Cin, 128) + cout_p * 128) * w_itemsize
    vmem_limit = int(min(vmem_cap - (2 << 20),
                         max(buf_bytes * 5 // 4 + wb_bytes + (2 << 20), 16 << 20)))

    if Cin <= 4:
        kernel = functools.partial(_outconv_kernel_vpu, nb=nb, cin=Cin)
    else:
        kernel = functools.partial(_outconv_kernel_mxu, nb=nb)

    cost = pl.CostEstimate(
        flops=2 * N * HW * Cin * Cout,
        transcendentals=0,
        bytes_accessed=itemsize * N * HW * (Cin + Cout)
        + w_itemsize * Cout * (Cin + 1),
    )

    out = pl.pallas_call(
        kernel,
        out_shape=jax.ShapeDtypeStruct((N, Cout, HW), x_nchw.dtype),
        grid=grid,
        in_specs=[
            pl.BlockSpec((nb, Cin, thw), lambda n, s: (n, 0, s)),
            pl.BlockSpec((Cout, Cin), lambda n, s: (0, 0)),   # weight, resident
            pl.BlockSpec((Cout, 1), lambda n, s: (0, 0)),     # bias, resident
        ],
        out_specs=pl.BlockSpec((nb, Cout, thw), lambda n, s: (n, 0, s)),
        compiler_params=pltpu.CompilerParams(
            dimension_semantics=("parallel", "parallel"),
            vmem_limit_bytes=vmem_limit,
        ),
        cost_estimate=cost,
    )(x, w, b)

    return out.reshape(N, Cout, H, W)


def reference_outconv(x_nchw, weight, bias):
    # Pure-JAX reference matching nn.Conv2d(kernel_size=1).
    w_mat = weight.reshape(weight.shape[0], weight.shape[1])  # (Cout, Cin)
    y = jnp.einsum("nchw,oc->nohw", x_nchw, w_mat)
    return y + bias[None, :, None, None]


if __name__ == "__main__":
    in_channels = 3
    out_channels = 2
    N, H, W = 2, 16, 16

    key = jax.random.PRNGKey(0)
    kx, kw, kb = jax.random.split(key, 3)

    x = jax.random.normal(kx, (N, in_channels, H, W), dtype=jnp.float32)
    # Deterministic synthetic params (Conv2d weight shape: (Cout, Cin, 1, 1)).
    fan_in = in_channels  # kernel_size=1
    bound = 1.0 / (fan_in ** 0.5)
    weight = jax.random.uniform(
        kw, (out_channels, in_channels, 1, 1), minval=-bound, maxval=bound,
        dtype=jnp.float32)
    bias = jax.random.uniform(
        kb, (out_channels,), minval=-bound, maxval=bound, dtype=jnp.float32)

    y = jax.block_until_ready(outconv_pallas(x, weight, bias))

    y_ref = reference_outconv(x, weight, bias)
    assert y.shape == (N, out_channels, H, W)
    assert jnp.allclose(y, y_ref, atol=1e-5, rtol=1e-5)

    print("KERNEL_OK")
</pallas_src>

<mosaic_0001>
module attributes {stable_mosaic.version = 11 : i64} {
  func.func @_outconv_kernel_vpu(%arg0: i32, %arg1: i32, %arg2: memref<2x3x256xf32, #tpu.memory_space<vmem>>, %arg3: memref<2x3xf32, #tpu.memory_space<vmem>>, %arg4: memref<2x1xf32, #tpu.memory_space<vmem>>, %arg5: memref<2x2x256xf32, #tpu.memory_space<vmem>>) attributes {dimension_semantics = [#tpu.dimension_semantics<parallel>, #tpu.dimension_semantics<parallel>], iteration_bounds = array<i64: 1, 1>, scalar_prefetch = 0 : i64, scratch_operands = 0 : i64, tpu.core_type = #tpu.core_type<tc>, window_params = [{transform_indices = @transform_0, window_bounds = array<i64: 2, 3, 256>}, {pipeline_mode = #tpu.pipeline_mode<synchronous>, transform_indices = @transform_1, window_bounds = array<i64: 2, 3>}, {pipeline_mode = #tpu.pipeline_mode<synchronous>, transform_indices = @transform_2, window_bounds = array<i64: 2, 1>}, {transform_indices = @transform_3, window_bounds = array<i64: 2, 2, 256>}]} {
    %c0 = arith.constant 0 : index
    %c0_0 = arith.constant 0 : index
    %0 = vector.load %arg3[%c0, %c0_0] : memref<2x3xf32, #tpu.memory_space<vmem>>, vector<2x3xf32>
    %c0_1 = arith.constant 0 : index
    %c0_2 = arith.constant 0 : index
    %1 = vector.load %arg4[%c0_1, %c0_2] : memref<2x1xf32, #tpu.memory_space<vmem>>, vector<2x1xf32>
    %2 = vector.extract_strided_slice %0 {offsets = [0, 0], sizes = [2, 1], strides = [1, 1]} : vector<2x3xf32> to vector<2x1xf32>
    %c0_3 = arith.constant 0 : index
    %c0_4 = arith.constant 0 : index
    %c0_5 = arith.constant 0 : index
    %3 = vector.load %arg2[%c0_3, %c0_4, %c0_5] : memref<2x3x256xf32, #tpu.memory_space<vmem>>, vector<1x1x256xf32>
    %4 = vector.shape_cast %3 : vector<1x1x256xf32> to vector<1x256xf32>
    %5 = vector.broadcast %2 : vector<2x1xf32> to vector<2x256xf32>
    %6 = vector.broadcast %4 : vector<1x256xf32> to vector<2x256xf32>
    %7 = arith.mulf %5, %6 : vector<2x256xf32>
    %8 = vector.broadcast %1 : vector<2x1xf32> to vector<2x256xf32>
    %9 = arith.addf %8, %7 : vector<2x256xf32>
    %10 = vector.extract_strided_slice %0 {offsets = [0, 1], sizes = [2, 1], strides = [1, 1]} : vector<2x3xf32> to vector<2x1xf32>
    %c0_6 = arith.constant 0 : index
    %c1 = arith.constant 1 : index
    %c0_7 = arith.constant 0 : index
    %11 = vector.load %arg2[%c0_6, %c1, %c0_7] : memref<2x3x256xf32, #tpu.memory_space<vmem>>, vector<1x1x256xf32>
    %12 = vector.shape_cast %11 : vector<1x1x256xf32> to vector<1x256xf32>
    %13 = vector.broadcast %10 : vector<2x1xf32> to vector<2x256xf32>
    %14 = vector.broadcast %12 : vector<1x256xf32> to vector<2x256xf32>
    %15 = arith.mulf %13, %14 : vector<2x256xf32>
    %16 = arith.addf %9, %15 : vector<2x256xf32>
    %17 = vector.extract_strided_slice %0 {offsets = [0, 2], sizes = [2, 1], strides = [1, 1]} : vector<2x3xf32> to vector<2x1xf32>
    %c0_8 = arith.constant 0 : index
    %c2 = arith.constant 2 : index
    %c0_9 = arith.constant 0 : index
    %18 = vector.load %arg2[%c0_8, %c2, %c0_9] : memref<2x3x256xf32, #tpu.memory_space<vmem>>, vector<1x1x256xf32>
    %19 = vector.shape_cast %18 : vector<1x1x256xf32> to vector<1x256xf32>
    %20 = vector.broadcast %17 : vector<2x1xf32> to vector<2x256xf32>
    %21 = vector.broadcast %19 : vector<1x256xf32> to vector<2x256xf32>
    %22 = arith.mulf %20, %21 : vector<2x256xf32>
    %23 = arith.addf %16, %22 : vector<2x256xf32>
    %c0_10 = arith.constant 0 : index
    %c0_11 = arith.constant 0 : index
    %c0_12 = arith.constant 0 : index
    %24 = vector.load %arg5[%c0_10, %c0_11, %c0_12] : memref<2x2x256xf32, #tpu.memory_space<vmem>>, vector<1x2x256xf32>
    %25 = vector.shape_cast %24 : vector<1x2x256xf32> to vector<2x256xf32>
    %26 = vector.shape_cast %23 : vector<2x256xf32> to vector<1x2x256xf32>
    tpu.vector_store %arg5[%c0_10, %c0_11, %c0_12], %26 {strides = array<i32>} : memref<2x2x256xf32, #tpu.memory_space<vmem>>, vector<1x2x256xf32>,
    %27 = vector.extract_strided_slice %0 {offsets = [0, 0], sizes = [2, 1], strides = [1, 1]} : vector<2x3xf32> to vector<2x1xf32>
    %c1_13 = arith.constant 1 : index
    %c0_14 = arith.constant 0 : index
    %c0_15 = arith.constant 0 : index
    %28 = vector.load %arg2[%c1_13, %c0_14, %c0_15] : memref<2x3x256xf32, #tpu.memory_space<vmem>>, vector<1x1x256xf32>
    %29 = vector.shape_cast %28 : vector<1x1x256xf32> to vector<1x256xf32>
    %30 = vector.broadcast %27 : vector<2x1xf32> to vector<2x256xf32>
    %31 = vector.broadcast %29 : vector<1x256xf32> to vector<2x256xf32>
    %32 = arith.mulf %30, %31 : vector<2x256xf32>
    %33 = vector.broadcast %1 : vector<2x1xf32> to vector<2x256xf32>
    %34 = arith.addf %33, %32 : vector<2x256xf32>
    %35 = vector.extract_strided_slice %0 {offsets = [0, 1], sizes = [2, 1], strides = [1, 1]} : vector<2x3xf32> to vector<2x1xf32>
    %c1_16 = arith.constant 1 : index
    %c1_17 = arith.constant 1 : index
    %c0_18 = arith.constant 0 : index
    %36 = vector.load %arg2[%c1_16, %c1_17, %c0_18] : memref<2x3x256xf32, #tpu.memory_space<vmem>>, vector<1x1x256xf32>
    %37 = vector.shape_cast %36 : vector<1x1x256xf32> to vector<1x256xf32>
    %38 = vector.broadcast %35 : vector<2x1xf32> to vector<2x256xf32>
    %39 = vector.broadcast %37 : vector<1x256xf32> to vector<2x256xf32>
    %40 = arith.mulf %38, %39 : vector<2x256xf32>
    %41 = arith.addf %34, %40 : vector<2x256xf32>
    %42 = vector.extract_strided_slice %0 {offsets = [0, 2], sizes = [2, 1], strides = [1, 1]} : vector<2x3xf32> to vector<2x1xf32>
    %c1_19 = arith.constant 1 : index
    %c2_20 = arith.constant 2 : index
    %c0_21 = arith.constant 0 : index
    %43 = vector.load %arg2[%c1_19, %c2_20, %c0_21] : memref<2x3x256xf32, #tpu.memory_space<vmem>>, vector<1x1x256xf32>
    %44 = vector.shape_cast %43 : vector<1x1x256xf32> to vector<1x256xf32>
    %45 = vector.broadcast %42 : vector<2x1xf32> to vector<2x256xf32>
    %46 = vector.broadcast %44 : vector<1x256xf32> to vector<2x256xf32>
    %47 = arith.mulf %45, %46 : vector<2x256xf32>
    %48 = arith.addf %41, %47 : vector<2x256xf32>
    %c1_22 = arith.constant 1 : index
    %c0_23 = arith.constant 0 : index
    %c0_24 = arith.constant 0 : index
    %49 = vector.load %arg5[%c1_22, %c0_23, %c0_24] : memref<2x2x256xf32, #tpu.memory_space<vmem>>, vector<1x2x256xf32>
    %50 = vector.shape_cast %49 : vector<1x2x256xf32> to vector<2x256xf32>
    %51 = vector.shape_cast %48 : vector<2x256xf32> to vector<1x2x256xf32>
    tpu.vector_store %arg5[%c1_22, %c0_23, %c0_24], %51 {strides = array<i32>} : memref<2x2x256xf32, #tpu.memory_space<vmem>>, vector<1x2x256xf32>,
    return
  }
  func.func @transform_0(%arg0: i32, %arg1: i32) -> (i32, i32, i32) {
    %c0_i32 = arith.constant 0 : i32
    %c0_i32_0 = arith.constant 0 : i32
    return %arg0, %c0_i32, %arg1 : i32, i32, i32
  }
  func.func @transform_1(%arg0: i32, %arg1: i32) -> (i32, i32) {
    %c0_i32 = arith.constant 0 : i32
    %c0_i32_0 = arith.constant 0 : i32
    %c0_i32_1 = arith.constant 0 : i32
    return %c0_i32, %c0_i32_0 : i32, i32
  }
  func.func @transform_2(%arg0: i32, %arg1: i32) -> (i32, i32) {
    %c0_i32 = arith.constant 0 : i32
    %c0_i32_0 = arith.constant 0 : i32
    %c0_i32_1 = arith.constant 0 : i32
    return %c0_i32, %c0_i32_0 : i32, i32
  }
  func.func @transform_3(%arg0: i32, %arg1: i32) -> (i32, i32, i32) {
    %c0_i32 = arith.constant 0 : i32
    %c0_i32_0 = arith.constant 0 : i32
    return %arg0, %c0_i32, %arg1 : i32, i32, i32
  }
}

</mosaic_0001>

<llo_original>
// kernel: tpu_custom_call.1
$region0: #{tpu_custom_call.1}
  #allocation0 [shape = 'u32[]', space=smem, size = 0x4, offset = 0x4, fixed_abs, tag = 'smem constant byte address 0x4 - core index']
  #allocation1 [shape = 'u32[144,128]{1,0:T(1,128)}', space=vmem, size = 0x12000, scoped, tag = 'internal scratch']
  %s0 = inlined_call_operand.vmem [shape: f32[2,3,256], index: 0, kind: input, shape index: {}]
  %s1 = inlined_call_operand.vmem [shape: f32[2,3], index: 1, kind: input, shape index: {}]
  %s2 = inlined_call_operand.vmem [shape: f32[2,1], index: 2, kind: input, shape index: {}]
  %s3 = inlined_call_operand.hbm [shape: f32[2,2,256], index: 3, kind: output, shape index: {}]
  %s4 = sld [smem:[#allocation0]]
  $region22: #{tpu_custom_call.1} parent=0
    _
  %s6 = ssub.s32 1, %s4
  %s7 = scalar_select 0, %s6, %s4
  $region1: #{tpu_custom_call.1} parent=0
    #allocation2 [shape = 'u8[4096]{0}', space=vmem, size = 0x1000, scoped, tag = 'output window, operand 0, single buffered']
    #allocation3 [shape = 's32[1]{0}', space=sflag, size = 0x4, scoped, tag = 'scoped memory for tpu_custom_call.1']
    %8 = vsyncpa [#allocation3], 0
    // Predicated region
    $region2: #{tpu_custom_call.1} parent=1 // pred_check
      _
    $region3: #{tpu_custom_call.1} parent=1 // pred_check_branch
      %10 = sbr.rel (0) target = $region5
    $region4: #{tpu_custom_call.1} parent=1 // pred_region
      _
    $region5: #{tpu_custom_call.1} parent=1 // pred_fallthru
      _
    // Predicated region
    $region6: #{tpu_custom_call.1} parent=1 // pred_check
      _
    $region7: #{tpu_custom_call.1} parent=1 // pred_check_branch
      %12 = sbr.rel (0) target = $region9
    $region8: #{tpu_custom_call.1} parent=1 // pred_region
      _
    $region9: #{tpu_custom_call.1} parent=1 // pred_fallthru
      _
    // Predicated region
    $region10: #{tpu_custom_call.1} parent=1 // pred_check
      _
    $region11: #{tpu_custom_call.1} parent=1 // pred_check_branch
      %14 = sbr.rel (0) target = $region13
    $region12: #{tpu_custom_call.1} parent=1 // pred_region
      _
    $region13: #{tpu_custom_call.1} parent=1 // pred_fallthru
      _
    %v15 = vld [vmem:[%s1] sm:$0x3]
    %v16 = vld [vmem:[%s2] sm:$0x3]
    %v17 = vld [vmem:[%s0] ss:$4 sm:$0x3]
    %19 = vset.pattern.permute.xlu0 0
    %20 = vperm.xlu0 %19, %v15
    %v21 = vpop.permute.xlu0 %20
    %v24 = vlaneseq
    %v25 = vshrl.u32 %v24, 7
    %v26 = vsub.s32 0, %v25
    %v27 = vrot.slane %v17, %v26
    %v28 = vlaneseq
    %v29 = vshrl.u32 %v28, 7
    %v30 = vsub.s32 1, %v29
    %v31 = vrot.slane %v17, %v30
    %v34 = vmul.f32 %v21, %v27
    %v35 = vmul.f32 %v21, %v31
    %37 = vset.pattern.permute.xlu0 0
    %38 = vperm.xlu0 %37, %v16
    %v39 = vpop.permute.xlu0 %38
    %v41 = vadd.f32 %v39, %v34
    %v42 = vadd.f32 %v39, %v35
    %s43 = scalar_lea.vmem %s0, 1
    %v44 = vld [vmem:[%s43] ss:$4 sm:$0x3]
    %45 = vset.pattern.permute.xlu0 1
    %46 = vperm.xlu0 %45, %v15
    %v47 = vpop.permute.xlu0 %46
    %v50 = vlaneseq
    %v51 = vshrl.u32 %v50, 7
    %v52 = vsub.s32 0, %v51
    %v53 = vrot.slane %v44, %v52
    %v54 = vlaneseq
    %v55 = vshrl.u32 %v54, 7
    %v56 = vsub.s32 1, %v55
    %v57 = vrot.slane %v44, %v56
    %v60 = vmul.f32 %v47, %v53
    %v61 = vmul.f32 %v47, %v57
    %v62 = vadd.f32 %v41, %v60
    %v63 = vadd.f32 %v42, %v61
    %s64 = scalar_lea.vmem %s0, 2
    %v65 = vld [vmem:[%s64] ss:$4 sm:$0x3]
    %66 = vset.pattern.permute.xlu0 2
    %67 = vperm.xlu0 %66, %v15
    %v68 = vpop.permute.xlu0 %67
    %v71 = vlaneseq
    %v72 = vshrl.u32 %v71, 7
    %v73 = vsub.s32 0, %v72
    %v74 = vrot.slane %v65, %v73
    %v75 = vlaneseq
    %v76 = vshrl.u32 %v75, 7
    %v77 = vsub.s32 1, %v76
    %v78 = vrot.slane %v65, %v77
    %v81 = vmul.f32 %v68, %v74
    %v82 = vmul.f32 %v68, %v78
    %v83 = vadd.f32 %v62, %v81
    %v84 = vadd.f32 %v63, %v82
    %v87 = vcombine.low %v83, %v84
    %v89 = vunpack.c.l.s4 1983009808
    %v90 = vunpack.c.0.s8 %v89
    %v91 = vlaneseq
    %v92 = vshrl.u32 %v91, 7
    %v93 = vsub.s32 %v90, %v92
    %v94 = vrot.slane %v87, %v93
    %96 = vst [vmem:[#allocation2] sm:$0xf] %v94
    %s97 = scalar_lea.vmem %s0, 8
    %v98 = vld [vmem:[%s97] ss:$4 sm:$0x3]
    %v100 = vlaneseq
    %v101 = vshrl.u32 %v100, 7
    %v102 = vsub.s32 0, %v101
    %v103 = vrot.slane %v98, %v102
    %v104 = vlaneseq
    %v105 = vshrl.u32 %v104, 7
    %v106 = vsub.s32 1, %v105
    %v107 = vrot.slane %v98, %v106
    %v110 = vmul.f32 %v21, %v103
    %v111 = vmul.f32 %v21, %v107
    %v112 = vadd.f32 %v39, %v110
    %v113 = vadd.f32 %v39, %v111
    %s114 = scalar_lea.vmem %s97, 1
    %v115 = vld [vmem:[%s114] ss:$4 sm:$0x3]
    %v117 = vlaneseq
    %v118 = vshrl.u32 %v117, 7
    %v119 = vsub.s32 0, %v118
    %v120 = vrot.slane %v115, %v119
    %v121 = vlaneseq
    %v122 = vshrl.u32 %v121, 7
    %v123 = vsub.s32 1, %v122
    %v124 = vrot.slane %v115, %v123
    %v127 = vmul.f32 %v47, %v120
    %v128 = vmul.f32 %v47, %v124
    %v129 = vadd.f32 %v112, %v127
    %v130 = vadd.f32 %v113, %v128
    %s131 = scalar_lea.vmem %s97, 2
    %v132 = vld [vmem:[%s131] ss:$4 sm:$0x3]
    %v134 = vlaneseq
    %v135 = vshrl.u32 %v134, 7
    %v136 = vsub.s32 0, %v135
    %v137 = vrot.slane %v132, %v136
    %v138 = vlaneseq
    %v139 = vshrl.u32 %v138, 7
    %v140 = vsub.s32 1, %v139
    %v141 = vrot.slane %v132, %v140
    %v144 = vmul.f32 %v68, %v137
    %v145 = vmul.f32 %v68, %v141
    %v146 = vadd.f32 %v129, %v144
    %v147 = vadd.f32 %v130, %v145
    %v150 = vcombine.low %v146, %v147
    %v152 = vunpack.c.l.s4 1983009808
    %v153 = vunpack.c.0.s8 %v152
    %v154 = vlaneseq
    %v155 = vshrl.u32 %v154, 7
    %v156 = vsub.s32 %v153, %v155
    %v157 = vrot.slane %v150, %v156
    %s159 = scalar_lea.vmem [#allocation2], 4
    %160 = vst [vmem:[%s159] sm:$0xf] %v157
    // Predicated region
    $region14: #{tpu_custom_call.1} parent=1 // pred_check
      _
    $region15: #{tpu_custom_call.1} parent=1 // pred_check_branch
      %162 = sbr.rel (0) target = $region17
    $region16: #{tpu_custom_call.1} parent=1 // pred_region
      %s164 = ssub.s32 128, 128
      %165 = vsyncadd [#allocation3], %s164
      %s166 = sshll.u32 [#allocation2], 4
      %s167 = int_to_ptr.vmem [resolvable:$true] %s166
      %172 = dma.vmem_to_hbm [thread:$0]  %s167, 128, %s3, [#allocation3], 64, 64, 4
    $region17: #{tpu_custom_call.1} parent=1 // pred_fallthru
      _
    // Predicated region
    $region18: #{tpu_custom_call.1} parent=1 // pred_check
      _
    $region19: #{tpu_custom_call.1} parent=1 // pred_check_branch
      %174 = sbr.rel (0) target = $region21
    $region20: #{tpu_custom_call.1} parent=1 // pred_region
      %175 = dma.done [#allocation3], 128
    $region21: #{tpu_custom_call.1} parent=1 // pred_fallthru
      _
    %176 = vsyncpa [#allocation3], 1

</llo_original>
